<compile_context>
chip_gen: v6e
topology: v6e:2x2x1
jax: 0.10.0
libtpu: 0.0.40
codegen_flags: <defaults>
</compile_context>

<pallas_src>
import functools
import re

import jax
import jax.numpy as jnp
from jax.experimental import pallas as pl
from jax.experimental.pallas import tpu as pltpu

EPS = 1e-5
LANE = 128
SUBLANE = 8


def _round_up(v, m):
    return (v + m - 1) // m * m


# --------------------------------------------------------------------------- kernels

def _bn_fused_kernel(x_ref, gamma_ref, beta_ref, o_ref, *, low_precision_out):
    """Whole batch resident per channel tile: one read of x computes stats + normalizes."""
    x_native = x_ref[...]                                # (N, tile_d), input dtype
    x = x_native.astype(jnp.float32)
    inv_n = jnp.float32(1.0 / x.shape[0])

    # One-pass statistics: sum and sum of squares (no full-size `centered` temporary).
    s = jnp.sum(x, axis=0, keepdims=True)                # (1, tile_d)
    sq = jnp.sum(x * x, axis=0, keepdims=True)           # (1, tile_d)
    mean = s * inv_n
    var = jnp.maximum(sq * inv_n - mean * mean, 0.0)     # biased var, clamped (cancellation)
    inv_std = jax.lax.rsqrt(var + EPS)

    # Fold affine so the per-element output path is x*scale + shift.
    scale = gamma_ref[...] * inv_std                     # (1, tile_d) f32
    shift = beta_ref[...] - mean * scale                 # (1, tile_d) f32
    if low_precision_out:
        # v6e/v7x: packed bf16 VALU on the dominant per-element pass; stats stayed f32.
        o_ref[...] = (x_native * scale.astype(o_ref.dtype)
                      + shift.astype(o_ref.dtype)).astype(o_ref.dtype)
    else:
        o_ref[...] = (x * scale + shift).astype(o_ref.dtype)


def _bn_stats_kernel(x_ref, gamma_ref, beta_ref, scale_ref, shift_ref, *, n_total, tile_n):
    """Large-N path, pass 1. grid = (d_tiles, n_chunks); reduction over the last axis.

    scale_ref / shift_ref (f32 outputs) double as (sum, sumsq) accumulators until the
    final chunk, where they are converted in place to folded scale / shift.
    """
    n_idx = pl.program_id(1)

    @pl.when(n_idx == 0)
    def _():
        scale_ref[...] = jnp.zeros_like(scale_ref)
        shift_ref[...] = jnp.zeros_like(shift_ref)

    x = x_ref[...].astype(jnp.float32)                               # (tile_n, tile_d)
    row = jax.lax.broadcasted_iota(jnp.int32, x.shape, 0) + n_idx * tile_n
    x = jnp.where(row < n_total, x, 0.0)                             # mask ragged last chunk
    scale_ref[...] += jnp.sum(x, axis=0, keepdims=True)              # running sum(x)
    shift_ref[...] += jnp.sum(x * x, axis=0, keepdims=True)          # running sum(x^2)

    @pl.when(n_idx == pl.num_programs(1) - 1)
    def _():
        inv_n = jnp.float32(1.0 / n_total)
        mean = scale_ref[...] * inv_n
        var = jnp.maximum(shift_ref[...] * inv_n - mean * mean, 0.0)
        inv_std = jax.lax.rsqrt(var + EPS)
        sc = gamma_ref[...] * inv_std
        scale_ref[...] = sc
        shift_ref[...] = beta_ref[...] - mean * sc


def _bn_apply_kernel(x_ref, scale_ref, shift_ref, o_ref, *, low_precision_out):
    """Large-N path, pass 2: out = x*scale + shift."""
    if low_precision_out:
        o_ref[...] = (x_ref[...] * scale_ref[...].astype(o_ref.dtype)
                      + shift_ref[...].astype(o_ref.dtype)).astype(o_ref.dtype)
    else:
        o_ref[...] = (x_ref[...].astype(jnp.float32) * scale_ref[...]
                      + shift_ref[...]).astype(o_ref.dtype)


# --------------------------------------------------------------------------- wrapper

def _tpu_vmem_and_generation():
    """Best-effort query of physical VMEM bytes and TPU generation (robust fallbacks)."""
    phys = 64 << 20  # conservative default (v7x per-TC VMEM)
    try:
        info = pltpu.get_tpu_info()
        for attr in ("vmem_capacity_bytes", "vmem_size_bytes", "vmem_bytes"):
            cap = getattr(info, attr, None)
            if cap:
                phys = int(cap)
                break
    except Exception:
        pass
    gen = None
    try:
        kind = jax.devices()[0].device_kind.lower().replace("tpu", "")
        m = re.search(r"(\d+)", kind)
        if m:
            gen = int(m.group(1))
    except Exception:
        pass
    return phys, gen


def linear_batch_norm(x, gamma, beta, *, max_tile_d=1024, vmem_budget_bytes=None):
    """Training-mode forward of LinearBatchNorm. x: (..., D); gamma, beta: (D,)."""
    D = gamma.shape[0]
    orig_shape = x.shape
    x2 = x.reshape(-1, D)                      # mirrors x.view(-1, dim); no-copy for (N, D)
    N = x2.shape[0]
    out_dtype = x.dtype
    in_item = jnp.dtype(x.dtype).itemsize

    phys_vmem, gen = _tpu_vmem_and_generation()
    if vmem_budget_bytes is None:
        # ~48 MiB on 128-MiB parts (v5e/v6e), ~24 MiB on 64-MiB v7x.
        vmem_budget_bytes = (3 * phys_vmem) // 8
    # Low-precision output path only where the VALU has native bf16 (>= v6e).
    low_precision_out = (out_dtype != jnp.float32) and (gen is None or gen >= 6)

    gamma2 = gamma.astype(jnp.float32).reshape(1, D)
    beta2 = beta.astype(jnp.float32).reshape(1, D)

    n_pad = _round_up(N, SUBLANE)
    d_lane = _round_up(D, LANE)

    # Lane-dense channel tile; keep >= 2 grid tiles when possible so v7x's two TCs both work.
    tile_d = min(_round_up(max_tile_d, LANE), d_lane)
    if d_lane >= 2 * LANE:
        tile_d = min(tile_d, _round_up(d_lane // 2, LANE))

    def fused_footprint(td):
        io = 2 * n_pad * td * in_item * 2          # in + out tiles, each double-buffered
        temps = 2 * n_pad * td * 4                 # f32 upcast + x*x intermediates
        small = 8 * td * 4                         # gamma/beta blocks + scale/shift rows
        return io + temps + small

    while tile_d > LANE and fused_footprint(tile_d) > vmem_budget_bytes:
        tile_d -= LANE

    # ---------------- single-pass path: whole batch column fits in VMEM -----------------
    if fused_footprint(tile_d) <= vmem_budget_bytes:
        vmem_limit = int(min(phys_vmem * 3 // 4,
                             max(32 << 20, 2 * fused_footprint(tile_d))))
        out = pl.pallas_call(
            functools.partial(_bn_fused_kernel, low_precision_out=low_precision_out),
            out_shape=jax.ShapeDtypeStruct((N, D), out_dtype),
            grid=(pl.cdiv(D, tile_d),),
            in_specs=[
                pl.BlockSpec((N, tile_d), lambda d: (0, d)),
                pl.BlockSpec((1, tile_d), lambda d: (0, d)),
                pl.BlockSpec((1, tile_d), lambda d: (0, d)),
            ],
            out_specs=pl.BlockSpec((N, tile_d), lambda d: (0, d)),
            compiler_params=pltpu.CompilerParams(
                dimension_semantics=("parallel",),   # channel tiles independent -> megacore
                vmem_limit_bytes=vmem_limit,
            ),
        )(x2, gamma2, beta2)
        return out.reshape(orig_shape)

    # ---------------- large-N fallback: N-chunked two-pass (stats, then normalize) ------
    tile_d = min(d_lane, 2 * LANE)
    per_row_bytes = tile_d * (4 * in_item + 8)        # in+out double-buffered + f32 temps
    tile_n = (vmem_budget_bytes // per_row_bytes) // SUBLANE * SUBLANE
    tile_n = int(max(SUBLANE, min(tile_n, n_pad)))

    d_tiles = pl.cdiv(D, tile_d)
    n_tiles = pl.cdiv(N, tile_n)
    footprint = tile_n * per_row_bytes + 16 * tile_d * 4
    vmem_limit = int(min(phys_vmem * 3 // 4, max(32 << 20, 2 * footprint)))

    scale, shift = pl.pallas_call(
        functools.partial(_bn_stats_kernel, n_total=N, tile_n=tile_n),
        out_shape=(jax.ShapeDtypeStruct((1, D), jnp.float32),
                   jax.ShapeDtypeStruct((1, D), jnp.float32)),
        grid=(d_tiles, n_tiles),
        in_specs=[
            pl.BlockSpec((tile_n, tile_d), lambda d, n: (n, d)),
            pl.BlockSpec((1, tile_d), lambda d, n: (0, d)),
            pl.BlockSpec((1, tile_d), lambda d, n: (0, d)),
        ],
        out_specs=(
            pl.BlockSpec((1, tile_d), lambda d, n: (0, d)),
            pl.BlockSpec((1, tile_d), lambda d, n: (0, d)),
        ),
        compiler_params=pltpu.CompilerParams(
            dimension_semantics=("parallel", "arbitrary"),   # N is the reduction axis
            vmem_limit_bytes=vmem_limit,
        ),
    )(x2, gamma2, beta2)

    out = pl.pallas_call(
        functools.partial(_bn_apply_kernel, low_precision_out=low_precision_out),
        out_shape=jax.ShapeDtypeStruct((N, D), out_dtype),
        grid=(d_tiles, n_tiles),
        in_specs=[
            pl.BlockSpec((tile_n, tile_d), lambda d, n: (n, d)),
            pl.BlockSpec((1, tile_d), lambda d, n: (0, d)),
            pl.BlockSpec((1, tile_d), lambda d, n: (0, d)),
        ],
        out_specs=pl.BlockSpec((tile_n, tile_d), lambda d, n: (n, d)),
        compiler_params=pltpu.CompilerParams(
            dimension_semantics=("parallel", "parallel"),
            vmem_limit_bytes=vmem_limit,
        ),
    )(x2, scale, shift)
    return out.reshape(orig_shape)


# --------------------------------------------------------------------------- self-test

if __name__ == "__main__":
    key = jax.random.PRNGKey(0)
    kx, kg, kb, kx2 = jax.random.split(key, 4)

    def ref_bn(xv, g, b):
        xf = xv.astype(jnp.float32)
        mean = jnp.mean(xf, axis=0, keepdims=True)
        var = jnp.mean((xf - mean) ** 2, axis=0, keepdims=True)  # biased, as BN2d training
        return (xf - mean) / jnp.sqrt(var + EPS) * g[None, :] + b[None, :]

    # Small shapes consistent with the module: batch=8, dim=32 (single-pass path).
    N, D = 8, 32
    x = jax.random.normal(kx, (N, D), dtype=jnp.float32)
    gamma = 1.0 + 0.1 * jax.random.normal(kg, (D,), dtype=jnp.float32)
    beta = 0.1 * jax.random.normal(kb, (D,), dtype=jnp.float32)

    out = jax.block_until_ready(linear_batch_norm(x, gamma, beta))
    assert out.shape == (N, D)
    assert jnp.allclose(out, ref_bn(x, gamma, beta), atol=1e-4, rtol=1e-4), \
        "single-pass path mismatch vs reference"

    # Exercise the large-N chunked fallback (ragged N chunk + ragged channel block) by
    # forcing a tiny VMEM budget.
    N2, D2 = 43, 200
    x2 = jax.random.normal(kx2, (N2, D2), dtype=jnp.float32)
    g2 = jnp.ones((D2,), jnp.float32)
    b2 = jnp.zeros((D2,), jnp.float32)
    out2 = jax.block_until_ready(
        linear_batch_norm(x2, g2, b2, vmem_budget_bytes=64 << 10))
    assert out2.shape == (N2, D2)
    assert jnp.allclose(out2, ref_bn(x2, g2, b2), atol=1e-4, rtol=1e-4), \
        "chunked path mismatch vs reference"

    print("KERNEL_OK")
</pallas_src>

<mosaic_0001>
module attributes {stable_mosaic.version = 11 : i64} {
  func.func @_bn_fused_kernel(%arg0: i32, %arg1: memref<8x128xf32, #tpu.memory_space<vmem>>, %arg2: memref<1x128xf32, #tpu.memory_space<vmem>>, %arg3: memref<1x128xf32, #tpu.memory_space<vmem>>, %arg4: memref<8x128xf32, #tpu.memory_space<vmem>>) attributes {dimension_semantics = [#tpu.dimension_semantics<parallel>], iteration_bounds = array<i64: 1>, scalar_prefetch = 0 : i64, scratch_operands = 0 : i64, tpu.core_type = #tpu.core_type<tc>, window_params = [{transform_indices = @transform_0, window_bounds = array<i64: 8, 128>}, {transform_indices = @transform_1, window_bounds = array<i64: 1, 128>}, {transform_indices = @transform_2, window_bounds = array<i64: 1, 128>}, {transform_indices = @transform_3, window_bounds = array<i64: 8, 128>}]} {
    %c0 = arith.constant 0 : index
    %c0_0 = arith.constant 0 : index
    %0 = vector.load %arg1[%c0, %c0_0] : memref<8x128xf32, #tpu.memory_space<vmem>>, vector<8x128xf32>
    %cst = arith.constant dense<0.000000e+00> : vector<128xf32>
    %1 = vector.multi_reduction <add>, %0, %cst [0] : vector<8x128xf32> to vector<128xf32>
    %2 = vector.shape_cast %1 : vector<128xf32> to vector<1x128xf32>
    %3 = arith.mulf %0, %0 : vector<8x128xf32>
    %cst_1 = arith.constant dense<0.000000e+00> : vector<128xf32>
    %4 = vector.multi_reduction <add>, %3, %cst_1 [0] : vector<8x128xf32> to vector<128xf32>
    %5 = vector.shape_cast %4 : vector<128xf32> to vector<1x128xf32>
    %cst_2 = arith.constant 1.250000e-01 : f32
    %6 = vector.broadcast %cst_2 : f32 to vector<1x128xf32>
    %7 = arith.mulf %2, %6 : vector<1x128xf32>
    %cst_3 = arith.constant 1.250000e-01 : f32
    %8 = vector.broadcast %cst_3 : f32 to vector<1x128xf32>
    %9 = arith.mulf %5, %8 : vector<1x128xf32>
    %10 = arith.mulf %7, %7 : vector<1x128xf32>
    %11 = arith.subf %9, %10 : vector<1x128xf32>
    %cst_4 = arith.constant 0.000000e+00 : f32
    %12 = vector.broadcast %cst_4 : f32 to vector<1x128xf32>
    %13 = arith.maximumf %11, %12 : vector<1x128xf32>
    %cst_5 = arith.constant 9.99999974E-6 : f32
    %14 = vector.broadcast %cst_5 : f32 to vector<1x128xf32>
    %15 = arith.addf %13, %14 : vector<1x128xf32>
    %16 = math.rsqrt %15 : vector<1x128xf32>
    %c0_6 = arith.constant 0 : index
    %c0_7 = arith.constant 0 : index
    %17 = vector.load %arg2[%c0_6, %c0_7] : memref<1x128xf32, #tpu.memory_space<vmem>>, vector<1x128xf32>
    %18 = arith.mulf %17, %16 : vector<1x128xf32>
    %c0_8 = arith.constant 0 : index
    %c0_9 = arith.constant 0 : index
    %19 = vector.load %arg3[%c0_8, %c0_9] : memref<1x128xf32, #tpu.memory_space<vmem>>, vector<1x128xf32>
    %20 = arith.mulf %7, %18 : vector<1x128xf32>
    %21 = arith.subf %19, %20 : vector<1x128xf32>
    %22 = vector.broadcast %18 : vector<1x128xf32> to vector<8x128xf32>
    %23 = arith.mulf %0, %22 : vector<8x128xf32>
    %24 = vector.broadcast %21 : vector<1x128xf32> to vector<8x128xf32>
    %25 = arith.addf %23, %24 : vector<8x128xf32>
    %c0_10 = arith.constant 0 : index
    %c0_11 = arith.constant 0 : index
    %26 = vector.load %arg4[%c0_10, %c0_11] : memref<8x128xf32, #tpu.memory_space<vmem>>, vector<8x128xf32>
    tpu.vector_store %arg4[%c0_10, %c0_11], %25 {strides = array<i32>} : memref<8x128xf32, #tpu.memory_space<vmem>>, vector<8x128xf32>,
    return
  }
  func.func @transform_0(%arg0: i32) -> (i32, i32) {
    %c0_i32 = arith.constant 0 : i32
    %c0_i32_0 = arith.constant 0 : i32
    return %c0_i32, %arg0 : i32, i32
  }
  func.func @transform_1(%arg0: i32) -> (i32, i32) {
    %c0_i32 = arith.constant 0 : i32
    %c0_i32_0 = arith.constant 0 : i32
    return %c0_i32, %arg0 : i32, i32
  }
  func.func @transform_2(%arg0: i32) -> (i32, i32) {
    %c0_i32 = arith.constant 0 : i32
    %c0_i32_0 = arith.constant 0 : i32
    return %c0_i32, %arg0 : i32, i32
  }
  func.func @transform_3(%arg0: i32) -> (i32, i32) {
    %c0_i32 = arith.constant 0 : i32
    %c0_i32_0 = arith.constant 0 : i32
    return %c0_i32, %arg0 : i32, i32
  }
}

</mosaic_0001>

<llo_original>
// kernel: tpu_custom_call.1
$region0: #{tpu_custom_call.1}
  #allocation0 [shape = 'u32[]', space=smem, size = 0x4, offset = 0x4, fixed_abs, tag = 'smem constant byte address 0x4 - core index']
  #allocation1 [shape = 'u32[144,128]{1,0:T(1,128)}', space=vmem, size = 0x12000, scoped, tag = 'internal scratch']
  %s0 = inlined_call_operand.hbm [shape: f32[8,32], index: 0, kind: input, shape index: {}]
  %s1 = inlined_call_operand.vmem [shape: f32[1,32], index: 1, kind: input, shape index: {}]
  %s2 = inlined_call_operand.vmem [shape: f32[1,32], index: 2, kind: input, shape index: {}]
  %s3 = inlined_call_operand.hbm [shape: f32[8,32], index: 3, kind: output, shape index: {}]
  %s4 = sld [smem:[#allocation0]]
  $region26: #{tpu_custom_call.1} parent=0
    _
  %s6 = ssub.s32 1, %s4
  %s7 = scalar_select 0, %s6, %s4
  $region1: #{tpu_custom_call.1} parent=0
    #allocation2 [shape = 'u8[4096]{0}', space=vmem, size = 0x1000, scoped, tag = 'input window, operand 0, single buffered']
    #allocation3 [shape = 's32[1]{0}', space=sflag, size = 0x4, scoped, tag = 'scoped memory for tpu_custom_call.1']
    #allocation4 [shape = 's32[1]{0}', space=sflag, size = 0x4, scoped, tag = 'scoped memory for tpu_custom_call.1']
    #allocation5 [shape = 'u8[4096]{0}', space=vmem, size = 0x1000, scoped, tag = 'output window, operand 0, single buffered']
    %8 = vsyncpa [#allocation3], 0
    %9 = vsyncpa [#allocation4], 0
    // Predicated region
    $region2: #{tpu_custom_call.1} parent=1 // pred_check
      _
    $region3: #{tpu_custom_call.1} parent=1 // pred_check_branch
      %11 = sbr.rel (0) target = $region5
    $region4: #{tpu_custom_call.1} parent=1 // pred_region
      %s13 = ssub.s32 128, 128
      %14 = vsyncadd [#allocation3], %s13
      %s16 = sshll.u32 [#allocation2], 4
      %s17 = int_to_ptr.vmem [resolvable:$true] %s16
      %19 = dma.hbm_to_vmem [thread:$0]  %s0, 128, %s17, [#allocation3]
    $region5: #{tpu_custom_call.1} parent=1 // pred_fallthru
      _
    // Predicated region
    $region6: #{tpu_custom_call.1} parent=1 // pred_check
      _
    $region7: #{tpu_custom_call.1} parent=1 // pred_check_branch
      %21 = sbr.rel (0) target = $region9
    $region8: #{tpu_custom_call.1} parent=1 // pred_region
      _
    $region9: #{tpu_custom_call.1} parent=1 // pred_fallthru
      _
    // Predicated region
    $region10: #{tpu_custom_call.1} parent=1 // pred_check
      _
    $region11: #{tpu_custom_call.1} parent=1 // pred_check_branch
      %23 = sbr.rel (0) target = $region13
    $region12: #{tpu_custom_call.1} parent=1 // pred_region
      _
    $region13: #{tpu_custom_call.1} parent=1 // pred_fallthru
      _
    // Predicated region
    $region14: #{tpu_custom_call.1} parent=1 // pred_check
      _
    $region15: #{tpu_custom_call.1} parent=1 // pred_check_branch
      %25 = sbr.rel (0) target = $region17
    $region16: #{tpu_custom_call.1} parent=1 // pred_region
      %26 = dma.done [#allocation3], 128
    $region17: #{tpu_custom_call.1} parent=1 // pred_fallthru
      _
    %v27 = vld [vmem:[#allocation2] sm:$0xff]
    %v28 = vrot.slane %v27, 4
    %v29 = vadd.f32 %v27, %v28
    %v30 = vrot.slane %v29, 2
    %v31 = vadd.f32 %v29, %v30
    %v32 = vrot.slane %v31, 1
    %v33 = vadd.f32 %v31, %v32
    %v34 = vmul.f32 %v27, %v27
    %v35 = vrot.slane %v34, 4
    %v36 = vadd.f32 %v34, %v35
    %v37 = vrot.slane %v36, 2
    %v38 = vadd.f32 %v36, %v37
    %v39 = vrot.slane %v38, 1
    %v40 = vadd.f32 %v38, %v39
    %v41 = vmul.f32 %v33, 0.125
    %v42 = vmul.f32 %v40, 0.125
    %v43 = vmul.f32 %v41, %v41
    %v44 = vsub.f32 %v42, %v43
    %v45 = vmax.f32 %v44, 0.0
    %v46 = vadd.f32 %v45, 1e-05
    %v47 = vrsqrt.pop %v46
    %v48 = vld [vmem:[%s1] sm:$0x1]
    %v49 = vmul.f32 %v48, %v47
    %v50 = vld [vmem:[%s2] sm:$0x1]
    %v51 = vmul.f32 %v41, %v49
    %v52 = vsub.f32 %v50, %v51
    %v54 = vlaneseq
    %v55 = vshrl.u32 %v54, 7
    %v56 = vsub.s32 0, %v55
    %v57 = vrot.slane %v49, %v56
    %v59 = vmul.f32 %v27, %v57
    %v61 = vlaneseq
    %v62 = vshrl.u32 %v61, 7
    %v63 = vsub.s32 0, %v62
    %v64 = vrot.slane %v52, %v63
    %v66 = vadd.f32 %v59, %v64
    %67 = vst [vmem:[#allocation5] sm:$0xff] %v66
    // Predicated region
    $region18: #{tpu_custom_call.1} parent=1 // pred_check
      _
    $region19: #{tpu_custom_call.1} parent=1 // pred_check_branch
      %69 = sbr.rel (0) target = $region21
    $region20: #{tpu_custom_call.1} parent=1 // pred_region
      %s71 = ssub.s32 128, 128
      %72 = vsyncadd [#allocation4], %s71
      %s74 = sshll.u32 [#allocation5], 4
      %s75 = int_to_ptr.vmem [resolvable:$true] %s74
      %77 = dma.vmem_to_hbm [thread:$0]  %s75, 128, %s3, [#allocation4]
    $region21: #{tpu_custom_call.1} parent=1 // pred_fallthru
      _
    // Predicated region
    $region22: #{tpu_custom_call.1} parent=1 // pred_check
      _
    $region23: #{tpu_custom_call.1} parent=1 // pred_check_branch
      %79 = sbr.rel (0) target = $region25
    $region24: #{tpu_custom_call.1} parent=1 // pred_region
      %80 = dma.done [#allocation4], 128
    $region25: #{tpu_custom_call.1} parent=1 // pred_fallthru
      _
    %81 = vsyncpa [#allocation3], 1
    %82 = vsyncpa [#allocation4], 1

</llo_original>
